<compile_context>
chip_gen: v5e
topology: v5e:2x2
jax: 0.10.0
libtpu: 0.0.40
codegen_flags: <defaults>
</compile_context>

<pallas_src>
import math

import jax
import jax.numpy as jnp
from jax import lax
from jax.experimental import pallas as pl
from jax.experimental.pallas import tpu as pltpu


def _round_up(x, m):
    return ((x + m - 1) // m) * m


def _vmem_spec():
    return pl.BlockSpec(memory_space=pltpu.MemorySpace.VMEM)


def _smem_spec():
    return pl.BlockSpec(memory_space=pltpu.MemorySpace.SMEM)


# ----------------------------------------------------------------------------
# Kernel 1: tiled image encoder
#   feats = img @ w_vis_folded + bias         (tiled over K, f32 accumulator)
#   emb   = normalize(feats @ w_vproj_t)      (finalize on last K step, bf16 out)
# ----------------------------------------------------------------------------

def image_encode_kernel(img_ref, wvis_ref, bias_ref, wvproj_ref, out_ref, acc_ref):
    k = pl.program_id(1)

    @pl.when(k == 0)
    def _():
        acc_ref[...] = jnp.zeros_like(acc_ref)

    # bf16 MXU matmul, f32 accumulation in VMEM scratch.
    acc_ref[...] += jnp.dot(img_ref[...], wvis_ref[...],
                            preferred_element_type=jnp.float32)

    @pl.when(k == pl.num_programs(1) - 1)
    def _():
        feats = acc_ref[...] + bias_ref[...]                    # (tm, Wv_pad) f32
        # visual_proj (Linear, no bias): feats @ W.T  (W.T padded & pre-cast)
        emb = jnp.dot(feats.astype(jnp.bfloat16), wvproj_ref[...],
                      preferred_element_type=jnp.float32)       # (tm, D_pad) f32
        # F.normalize(dim=-1), eps=1e-12  ==  x * rsqrt(max(sum(x^2), 1e-24))
        inv = lax.rsqrt(jnp.maximum(jnp.sum(emb * emb, axis=-1, keepdims=True),
                                    1e-24))
        out_ref[...] = (emb * inv).astype(out_ref.dtype)        # bf16 writeback


# ----------------------------------------------------------------------------
# Kernel 2: fused textual projection + L2 norm + contrastive loss
# ----------------------------------------------------------------------------
# TODO(synk): at production batch sizes (Bp >= ~2k) this single-shot kernel
# should be tiled flash-style over row blocks of the similarity matrix
# (especially on v7x / v5e VMEM); vmem_limit_bytes is set explicitly below.

def loss_kernel(n_ref, logit_scale_ref, img_ref, txtfeat_ref, wtproj_ref,
                loss_ref, scale_ref):
    n = n_ref[0]                                               # actual batch size
    # logit_scale clamp(max=4.6052) then exp
    scale = jnp.exp(jnp.minimum(logit_scale_ref[0], 4.6052))

    # textual_proj (Linear, no bias) + L2 normalize (rsqrt -> EUP slot).
    temb = jnp.dot(txtfeat_ref[...], wtproj_ref[...],
                   preferred_element_type=jnp.float32)          # (Bp, Dp) f32
    t_inv = lax.rsqrt(jnp.maximum(jnp.sum(temb * temb, axis=-1, keepdims=True),
                                  1e-24))
    # Fold the logit scale into the normalized text embedding: Bp*D multiplies
    # instead of a full Bp^2 scaling pass on the logits matrix.
    temb_s = (temb * (t_inv * scale)).astype(jnp.bfloat16)      # (Bp, Dp) bf16

    img = img_ref[...]                                          # (Bp, Dp) bf16, unit rows

    # Single BxB similarity matrix; text logits are its transpose.
    contract_last = (((1,), (1,)), ((), ()))
    logits = lax.dot_general(img, temb_s, contract_last,
                             preferred_element_type=jnp.float32)  # (Bp, Bp) f32

    Bp = logits.shape[0]
    # Validity mask from a (Bp,1) row iota and a (1,Bp) col iota (no full
    # Bp^2 iota materializations).
    row_valid = lax.broadcasted_iota(jnp.int32, (Bp, 1), 0) < n
    col_valid = lax.broadcasted_iota(jnp.int32, (1, Bp), 1) < n
    masked = jnp.where(row_valid & col_valid, logits, jnp.float32(-1e30))

    # One exp pass against the global max; derive row-LSE and col-LSE from the
    # same exp matrix (|valid logits| <= exp(4.6052) ~= 100, safe in f32).
    gmax = jnp.max(masked)
    e = jnp.exp(masked - gmax)
    row_sum = jnp.sum(e, axis=-1, keepdims=True)                          # (Bp,1)
    col_sum = jnp.sum(e, axis=0, keepdims=True)                           # (1,Bp)
    row_lse = gmax + jnp.log(jnp.maximum(row_sum, 1e-37))
    col_lse = gmax + jnp.log(jnp.maximum(col_sum, 1e-37))

    # Target (diagonal) logits from the same bf16-cast operands as the matmul.
    diag = jnp.sum(img.astype(jnp.float32) * temb_s.astype(jnp.float32),
                   axis=-1, keepdims=True)                                # (Bp,1)

    sum_row_lse = jnp.sum(jnp.where(row_valid, row_lse, 0.0))
    sum_col_lse = jnp.sum(jnp.where(col_valid, col_lse, 0.0))
    sum_diag = jnp.sum(jnp.where(row_valid, diag, 0.0))

    inv_n = 1.0 / n.astype(jnp.float32)
    loss_ref[0] = 0.5 * (sum_row_lse + sum_col_lse - 2.0 * sum_diag) * inv_n
    scale_ref[0] = scale


# ----------------------------------------------------------------------------
# One-time parameter preprocessing (hoisted out of the per-call path)
# ----------------------------------------------------------------------------

def prepare_params(raw, C, H, W):
    K = C * H * W
    Wv = raw["w_vis"].shape[1]
    D = raw["w_vproj"].shape[0]
    Wt = raw["w_tproj"].shape[1]

    Wv_pad = _round_up(Wv, 128)
    D_pad = _round_up(D, 128)
    Wt_pad = _round_up(Wt, 128)

    # Lane-align K once (only if needed), then pick the largest <=512 tile that
    # divides it exactly: no dead zero-multiply reduction steps.
    K_pad = _round_up(K, 128)
    tk_candidates = [c for c in (512, 384, 256, 128) if K_pad % c == 0]

    # Fold pixel mean/std into the (stand-in linear) visual weight.
    inv_std = (1.0 / raw["pixel_std"]).astype(jnp.float32)              # (C,)
    inv_std_full = jnp.repeat(inv_std, H * W)                           # (K,)
    mean_full = jnp.repeat(raw["pixel_mean"].astype(jnp.float32), H * W)
    w_vis_folded = raw["w_vis"].astype(jnp.float32) * inv_std_full[:, None]
    vis_bias = -(mean_full * inv_std_full) @ raw["w_vis"].astype(jnp.float32)

    w_vis_folded = jnp.pad(w_vis_folded,
                           ((0, K_pad - K), (0, Wv_pad - Wv))).astype(jnp.bfloat16)
    vis_bias = jnp.pad(vis_bias, (0, Wv_pad - Wv)).reshape(1, Wv_pad).astype(jnp.float32)

    # Projection weights: transpose + pad once, store bf16 for MXU.
    w_vproj_t = jnp.pad(jnp.transpose(raw["w_vproj"]).astype(jnp.float32),
                        ((0, Wv_pad - Wv), (0, D_pad - D))).astype(jnp.bfloat16)
    w_tproj_t = jnp.pad(jnp.transpose(raw["w_tproj"]).astype(jnp.float32),
                        ((0, Wt_pad - Wt), (0, D_pad - D))).astype(jnp.bfloat16)

    return {
        "w_vis_folded": w_vis_folded,         # (K_pad, Wv_pad) bf16
        "vis_bias": vis_bias,                 # (1, Wv_pad) f32
        "w_vproj_t": w_vproj_t,               # (Wv_pad, D_pad) bf16
        "w_tproj_t": w_tproj_t,               # (Wt_pad, D_pad) bf16
        "token_embedding": raw["token_embedding"].astype(jnp.float32),
        "logit_scale": raw["logit_scale"].astype(jnp.float32),
        "context_length": raw["context_length"],
        "K": K, "K_pad": K_pad, "tk_candidates": tk_candidates,
        "Wv_pad": Wv_pad, "D_pad": D_pad, "Wt_pad": Wt_pad,
    }


# ----------------------------------------------------------------------------
# Wrappers
# ----------------------------------------------------------------------------

def _image_vmem_bytes(tm, tk, Wv_pad, D_pad):
    acc = tm * Wv_pad * 4                  # f32 accumulator scratch
    img = 2 * tm * tk * 2                  # double-buffered bf16 image tiles
    wvis = 2 * tk * Wv_pad * 2             # double-buffered bf16 weight tiles
    bias = Wv_pad * 4                      # Buffered(1)
    wvproj = Wv_pad * D_pad * 2            # Buffered(1)
    out = 2 * tm * D_pad * 2               # double-buffered bf16 output tiles
    return acc + img + wvis + bias + wvproj + out


def encode_image(images, prep, Bp):
    B, C, H, W = images.shape
    K, K_pad = prep["K"], prep["K_pad"]
    Wv_pad, D_pad = prep["Wv_pad"], prep["D_pad"]

    # tm covers the whole padded batch so the visual weight streams from HBM
    # exactly once (the kernel is weight-streaming bound at CLIP batch sizes).
    # If the VMEM budget is exceeded, shrink tk first, tm last (tm stays a
    # divisor of Bp, so pl.cdiv covers every row).
    budget = 20 << 20
    tk_candidates = prep["tk_candidates"]
    tk_i = 0
    tk = tk_candidates[tk_i]
    tm = Bp
    while (_image_vmem_bytes(tm, tk, Wv_pad, D_pad) > budget
           and tk_i + 1 < len(tk_candidates)):
        tk_i += 1
        tk = tk_candidates[tk_i]
    while (_image_vmem_bytes(tm, tk, Wv_pad, D_pad) > budget
           and tm > 16 and (tm // 2) % 8 == 0):
        tm //= 2

    # Batch pad + bf16 cast in one fused XLA pass; no K padding when 128 | K.
    img = images.reshape(B, K).astype(jnp.bfloat16)
    img = jnp.pad(img, ((0, Bp - B), (0, K_pad - K)))

    grid = (pl.cdiv(Bp, tm), K_pad // tk)
    vmem_limit = int(min(100 << 20,
                         max(2 * _image_vmem_bytes(tm, tk, Wv_pad, D_pad) + (2 << 20),
                             16 << 20)))

    out = pl.pallas_call(
        image_encode_kernel,
        out_shape=jax.ShapeDtypeStruct((Bp, D_pad), jnp.bfloat16),
        grid_spec=pltpu.PrefetchScalarGridSpec(
            num_scalar_prefetch=0,
            grid=grid,
            in_specs=[
                pl.BlockSpec((tm, tk), lambda i, k: (i, k)),
                pl.BlockSpec((tk, Wv_pad), lambda i, k: (k, 0)),
                # constant-index operands: single buffer, no wasted VMEM
                pl.BlockSpec((1, Wv_pad), lambda i, k: (0, 0),
                             pipeline_mode=pl.Buffered(1)),
                pl.BlockSpec((Wv_pad, D_pad), lambda i, k: (0, 0),
                             pipeline_mode=pl.Buffered(1)),
            ],
            out_specs=pl.BlockSpec((tm, D_pad), lambda i, k: (i, 0)),
            scratch_shapes=[pltpu.VMEM((tm, Wv_pad), jnp.float32)],
        ),
        compiler_params=pltpu.CompilerParams(
            dimension_semantics=("parallel", "arbitrary"),
            vmem_limit_bytes=vmem_limit),
    )(img, prep["w_vis_folded"], prep["vis_bias"], prep["w_vproj_t"])
    return out                                   # (Bp, D_pad) bf16, L2-normalized rows


def encode_text_feats(tokens_list, prep, Bp):
    context_length = prep["context_length"]
    # truncation rule from CLIPBaseline.encode_text (keep EOT as last token)
    # TODO(synk): host-side per-sample truncation/padding retraces per unique
    # length combination; fine for this stand-in path.
    trunc = []
    for t in tokens_list:
        t = jnp.asarray(t, jnp.int32)
        if t.shape[0] > context_length:
            eot = t[-1]
            t = t[:context_length].at[-1].set(eot)
        trunc.append(t)
    # pad_sequence(batch_first=True), pad value 0
    max_len = max(int(t.shape[0]) for t in trunc)
    tokens = jnp.stack(
        [jnp.pad(t, (0, max_len - t.shape[0])) for t in trunc], axis=0
    )  # (B, L) int32

    # TODO(synk): stand-in textual encoder = embedding lookup (identity transformer)
    text_feats = prep["token_embedding"][tokens]                 # (B, L, Wt)
    eos_idx = jnp.argmax(tokens, axis=-1)                        # EOS position
    B = tokens.shape[0]
    sel = text_feats[jnp.arange(B), eos_idx]                     # (B, Wt)

    Wt = sel.shape[1]
    sel = jnp.pad(sel, ((0, Bp - B), (0, prep["Wt_pad"] - Wt))).astype(jnp.bfloat16)
    return sel                                                   # (Bp, Wt_pad) bf16


def contrastive_loss(img_emb_pad, txt_feats_pad, w_tproj_t, logit_scale, n_valid):
    Bp, D_pad = img_emb_pad.shape
    Wt_pad = txt_feats_pad.shape[1]
    # inputs + ~5 live Bp^2 f32 temporaries + text-embedding temporaries
    est = (Bp * D_pad * 2 + Bp * Wt_pad * 2 + Wt_pad * D_pad * 2
           + 5 * Bp * Bp * 4 + 3 * Bp * D_pad * 4)
    vmem_limit = int(min(100 << 20, max(2 * est + (2 << 20), 16 << 20)))

    loss, scale = pl.pallas_call(
        loss_kernel,
        out_shape=(jax.ShapeDtypeStruct((1,), jnp.float32),
                   jax.ShapeDtypeStruct((1,), jnp.float32)),
        in_specs=[_smem_spec(), _smem_spec(),
                  _vmem_spec(), _vmem_spec(), _vmem_spec()],
        out_specs=(_smem_spec(), _smem_spec()),
        compiler_params=pltpu.CompilerParams(vmem_limit_bytes=vmem_limit),
    )(jnp.array([n_valid], jnp.int32),
      logit_scale.reshape(1).astype(jnp.float32),
      img_emb_pad, txt_feats_pad, w_tproj_t)
    return loss[0], scale[0]


def clip_baseline_forward(prep, images, tokens_list):
    B = images.shape[0]
    Bp = _round_up(B, 16)                                 # bf16 sublane alignment

    img_emb = encode_image(images, prep, Bp)              # (Bp, D_pad) bf16, normalized
    txt_feats = encode_text_feats(tokens_list, prep, Bp)  # (Bp, Wt_pad) bf16

    # TODO(synk): dist.gather_across_processes -> identity (single process, rank 0)
    loss, scale = contrastive_loss(img_emb, txt_feats, prep["w_tproj_t"],
                                   prep["logit_scale"], B)
    return {"loss": loss,
            "logging": {"contrastive_loss": loss, "logit_scale": scale}}


# ----------------------------------------------------------------------------
# Main
# ----------------------------------------------------------------------------

if __name__ == "__main__":
    B, C, H, W = 2, 3, 16, 16
    visual_width, textual_width = 64, 32
    embed_dim = 32
    context_length = 8
    vocab_size = 50

    key = jax.random.PRNGKey(0)
    k_img, k_wvis, k_wvp, k_wtp, k_emb, k_tok = jax.random.split(key, 6)

    raw = {
        "pixel_mean": jnp.array([0.485, 0.456, 0.406], jnp.float32),
        "pixel_std": jnp.array([0.229, 0.224, 0.225], jnp.float32),
        # stand-in visual encoder (single linear)
        "w_vis": jax.random.normal(k_wvis, (C * H * W, visual_width), jnp.float32)
                 * (C * H * W) ** (-0.5),
        # nn.Linear(visual.width, embed_dim, bias=False), std = width^-0.5
        "w_vproj": jax.random.normal(k_wvp, (embed_dim, visual_width), jnp.float32)
                   * visual_width ** (-0.5),
        # nn.Linear(textual.width, embed_dim, bias=False), std = width^-0.5
        "w_tproj": jax.random.normal(k_wtp, (embed_dim, textual_width), jnp.float32)
                   * textual_width ** (-0.5),
        "token_embedding": jax.random.normal(k_emb, (vocab_size, textual_width),
                                             jnp.float32) * 0.02,
        "logit_scale": jnp.array(math.log(1.0 / 0.07), jnp.float32),
        "context_length": context_length,
    }

    # one-time parameter preprocessing (weight folding, padding, transposes)
    prep = prepare_params(raw, C, H, W)

    # example inputs: images in [0, 1], variable-length token lists
    images = jax.random.uniform(k_img, (B, C, H, W), jnp.float32)
    tok_all = jax.random.randint(k_tok, (B, 12), 1, vocab_size, jnp.int32)
    tokens_list = [tok_all[0, :5], tok_all[1, :12]]   # second exceeds context_length

    out = clip_baseline_forward(prep, images, tokens_list)
    jax.block_until_ready(out["loss"])
    jax.block_until_ready(out["logging"]["logit_scale"])
    print("KERNEL_OK")
</pallas_src>

<mosaic_0001>
module attributes {stable_mosaic.version = 11 : i64} {
  func.func @image_encode_kernel(%arg0: i32, %arg1: i32, %arg2: memref<16x384xbf16, #tpu.memory_space<vmem>>, %arg3: memref<384x128xbf16, #tpu.memory_space<vmem>>, %arg4: memref<1x128xf32, #tpu.memory_space<vmem>>, %arg5: memref<128x128xbf16, #tpu.memory_space<vmem>>, %arg6: memref<16x128xbf16, #tpu.memory_space<vmem>>, %arg7: memref<16x128xf32, #tpu.memory_space<vmem>>) attributes {dimension_semantics = [#tpu.dimension_semantics<parallel>, #tpu.dimension_semantics<arbitrary>], iteration_bounds = array<i64: 1, 2>, scalar_prefetch = 0 : i64, scratch_operands = 1 : i64, tpu.core_type = #tpu.core_type<tc>, window_params = [{transform_indices = @transform_0, window_bounds = array<i64: 16, 384>}, {transform_indices = @transform_1, window_bounds = array<i64: 384, 128>}, {pipeline_mode = #tpu.pipeline_mode<synchronous>, transform_indices = @transform_2, window_bounds = array<i64: 1, 128>}, {pipeline_mode = #tpu.pipeline_mode<synchronous>, transform_indices = @transform_3, window_bounds = array<i64: 128, 128>}, {transform_indices = @transform_4, window_bounds = array<i64: 16, 128>}]} {
    %c0_i32 = arith.constant 0 : i32
    %0 = arith.cmpi eq, %arg1, %c0_i32 : i32
    %1 = arith.extui %0 : i1 to i32
    %c0_i32_0 = arith.constant 0 : i32
    %2 = arith.cmpi ne, %1, %c0_i32_0 : i32
    scf.if %2 {
      %cst_9 = arith.constant 0.000000e+00 : f32
      %12 = vector.broadcast %cst_9 : f32 to vector<16x128xf32>
      %c0_10 = arith.constant 0 : index
      %c0_11 = arith.constant 0 : index
      %13 = vector.load %arg7[%c0_10, %c0_11] : memref<16x128xf32, #tpu.memory_space<vmem>>, vector<16x128xf32>
      tpu.vector_store %arg7[%c0_10, %c0_11], %12 {strides = array<i32>} : memref<16x128xf32, #tpu.memory_space<vmem>>, vector<16x128xf32>,
    } else {
    }
    %c0 = arith.constant 0 : index
    %c0_1 = arith.constant 0 : index
    %3 = vector.load %arg7[%c0, %c0_1] : memref<16x128xf32, #tpu.memory_space<vmem>>, vector<16x128xf32>
    %c0_2 = arith.constant 0 : index
    %c0_3 = arith.constant 0 : index
    %4 = vector.load %arg2[%c0_2, %c0_3] : memref<16x384xbf16, #tpu.memory_space<vmem>>, vector<16x384xbf16>
    %c0_4 = arith.constant 0 : index
    %c0_5 = arith.constant 0 : index
    %5 = vector.load %arg3[%c0_4, %c0_5] : memref<384x128xbf16, #tpu.memory_space<vmem>>, vector<384x128xbf16>
    %cst = arith.constant dense<0.000000e+00> : vector<16x128xf32>
    %6 = tpu.matmul %4, %5, %cst {dimension_numbers = #tpu.dot_dimension_numbers<[1], [0], [0], [1], [0, 0, 1, 1], [], []>} : vector<16x384xbf16>, vector<384x128xbf16>, vector<16x128xf32> -> vector<16x128xf32>
    %7 = arith.addf %3, %6 : vector<16x128xf32>
    %c0_6 = arith.constant 0 : index
    %c0_7 = arith.constant 0 : index
    %8 = vector.load %arg7[%c0_6, %c0_7] : memref<16x128xf32, #tpu.memory_space<vmem>>, vector<16x128xf32>
    tpu.vector_store %arg7[%c0_6, %c0_7], %7 {strides = array<i32>} : memref<16x128xf32, #tpu.memory_space<vmem>>, vector<16x128xf32>,
    %c1_i32 = arith.constant 1 : i32
    %9 = arith.cmpi eq, %arg1, %c1_i32 : i32
    %10 = arith.extui %9 : i1 to i32
    %c0_i32_8 = arith.constant 0 : i32
    %11 = arith.cmpi ne, %10, %c0_i32_8 : i32
    scf.if %11 {
      %c0_9 = arith.constant 0 : index
      %c0_10 = arith.constant 0 : index
      %12 = vector.load %arg7[%c0_9, %c0_10] : memref<16x128xf32, #tpu.memory_space<vmem>>, vector<16x128xf32>
      %c0_11 = arith.constant 0 : index
      %c0_12 = arith.constant 0 : index
      %13 = vector.load %arg4[%c0_11, %c0_12] : memref<1x128xf32, #tpu.memory_space<vmem>>, vector<1x128xf32>
      %14 = vector.broadcast %13 : vector<1x128xf32> to vector<16x128xf32>
      %15 = arith.addf %12, %14 : vector<16x128xf32>
      %16 = arith.truncf %15 : vector<16x128xf32> to vector<16x128xbf16>
      %c0_13 = arith.constant 0 : index
      %c0_14 = arith.constant 0 : index
      %17 = vector.load %arg5[%c0_13, %c0_14] : memref<128x128xbf16, #tpu.memory_space<vmem>>, vector<128x128xbf16>
      %cst_15 = arith.constant dense<0.000000e+00> : vector<16x128xf32>
      %18 = tpu.matmul %16, %17, %cst_15 {dimension_numbers = #tpu.dot_dimension_numbers<[1], [0], [0], [1], [0, 0, 1, 1], [], []>} : vector<16x128xbf16>, vector<128x128xbf16>, vector<16x128xf32> -> vector<16x128xf32>
      %19 = arith.mulf %18, %18 : vector<16x128xf32>
      %cst_16 = arith.constant dense<0.000000e+00> : vector<16xf32>
      %20 = vector.multi_reduction <add>, %19, %cst_16 [1] : vector<16x128xf32> to vector<16xf32>
      %21 = vector.shape_cast %20 : vector<16xf32> to vector<16x1xf32>
      %cst_17 = arith.constant 1.000000e-24 : f32
      %22 = vector.broadcast %cst_17 : f32 to vector<16x1xf32>
      %23 = arith.maximumf %21, %22 : vector<16x1xf32>
      %24 = math.rsqrt %23 : vector<16x1xf32>
      %25 = vector.broadcast %24 : vector<16x1xf32> to vector<16x128xf32>
      %26 = arith.mulf %18, %25 : vector<16x128xf32>
      %27 = arith.truncf %26 : vector<16x128xf32> to vector<16x128xbf16>
      %c0_18 = arith.constant 0 : index
      %c0_19 = arith.constant 0 : index
      %28 = vector.load %arg6[%c0_18, %c0_19] : memref<16x128xbf16, #tpu.memory_space<vmem>>, vector<16x128xbf16>
      tpu.vector_store %arg6[%c0_18, %c0_19], %27 {strides = array<i32>} : memref<16x128xbf16, #tpu.memory_space<vmem>>, vector<16x128xbf16>,
    } else {
    }
    return
  }
  func.func @transform_0(%arg0: i32, %arg1: i32) -> (i32, i32) {
    %c0_i32 = arith.constant 0 : i32
    return %arg0, %arg1 : i32, i32
  }
  func.func @transform_1(%arg0: i32, %arg1: i32) -> (i32, i32) {
    %c0_i32 = arith.constant 0 : i32
    %c0_i32_0 = arith.constant 0 : i32
    return %arg1, %c0_i32 : i32, i32
  }
  func.func @transform_2(%arg0: i32, %arg1: i32) -> (i32, i32) {
    %c0_i32 = arith.constant 0 : i32
    %c0_i32_0 = arith.constant 0 : i32
    %c0_i32_1 = arith.constant 0 : i32
    return %c0_i32, %c0_i32_0 : i32, i32
  }
  func.func @transform_3(%arg0: i32, %arg1: i32) -> (i32, i32) {
    %c0_i32 = arith.constant 0 : i32
    %c0_i32_0 = arith.constant 0 : i32
    %c0_i32_1 = arith.constant 0 : i32
    return %c0_i32, %c0_i32_0 : i32, i32
  }
  func.func @transform_4(%arg0: i32, %arg1: i32) -> (i32, i32) {
    %c0_i32 = arith.constant 0 : i32
    %c0_i32_0 = arith.constant 0 : i32
    return %arg0, %c0_i32 : i32, i32
  }
}

</mosaic_0001>

<llo_original>
// kernel: tpu_custom_call.1
$region0: #{tpu_custom_call.1}
  #allocation0 [shape = 'u32[]', space=smem, size = 0x4, offset = 0x4, fixed_abs, tag = 'smem constant byte address 0x4 - core index']
  #allocation1 [shape = 'u32[72,128]{1,0:T(1,128)}', space=vmem, size = 0x9000, scoped, tag = 'internal scratch']
  #allocation2 [shape = 'f32[16,128]{1,0:T(8,128)}', space=vmem, size = 0x2000, scoped, tag = 'scratch operand']
  %s0 = inlined_call_operand.hbm [shape: bf16[16,768], index: 0, kind: input, shape index: {}]
  %s1 = inlined_call_operand.hbm [shape: bf16[768,128], index: 1, kind: input, shape index: {}]
  %s2 = inlined_call_operand.vmem [shape: f32[1,128], index: 2, kind: input, shape index: {}]
  %s3 = inlined_call_operand.hbm [shape: bf16[128,128], index: 3, kind: input, shape index: {}]
  %s4 = inlined_call_operand.hbm [shape: bf16[16,128], index: 4, kind: output, shape index: {}]
  %s5 = sld [smem:[#allocation0]]
  $region69: #{tpu_custom_call.1} parent=0
    _
  %s7 = ssub.s32 1, %s5
  %s8 = scalar_select 0, %s7, %s5
  $region1: #{tpu_custom_call.1} parent=0
    #allocation3 [shape = 'u8[24576]{0}', space=vmem, size = 0x6000, scoped, tag = 'input window, operand 0']
    #allocation4 [shape = 's32[2]{0}', space=sflag, size = 0x8, scoped, tag = 'scoped memory for tpu_custom_call.1']
    #allocation5 [shape = 's32[2]{0}', space=sflag, size = 0x8, scoped, tag = 'scoped memory for tpu_custom_call.1']
    #allocation6 [shape = 'u8[196608]{0}', space=vmem, size = 0x30000, scoped, tag = 'input window, operand 1']
    #allocation7 [shape = 's32[2]{0}', space=sflag, size = 0x8, scoped, tag = 'scoped memory for tpu_custom_call.1']
    #allocation8 [shape = 'u8[32768]{0}', space=vmem, size = 0x8000, scoped, tag = 'input window, operand 3, single buffered']
    #allocation9 [shape = 'u8[4096]{0}', space=vmem, size = 0x1000, scoped, tag = 'output window, operand 0, single buffered']
    %9 = vsyncpa [#allocation4], 0
    %s10 = scalar_lea.sflag [#allocation4], 1
    %11 = vsyncpa %s10, 0
    %12 = vsyncpa [#allocation7], 0
    %s13 = scalar_lea.sflag [#allocation7], 1
    %14 = vsyncpa %s13, 0
    %15 = vsyncpa [#allocation5], 0
    loop: start=0, step=1, limit=4
    $region2: #{tpu_custom_call.1} parent=1 // loop_pre_header
      _
    $region3: #{tpu_custom_call.1} parent=1 // loop_header
      %s17 = sphi 0, %s21
      %p18 = scmp.ge.s32.totalorder %s17, 4
      %s24 = sphi 0, %s36
      %s25 = sphi 0, %s32
      %s26 = sphi 0, %s24
      %s27 = sphi 0, %s25
      %s28 = sphi 0, %s26
      %s29 = sphi 0, %s27
      %s41 = sphi 0, %s43
      %s44 = sphi 0, %s41
      %s45 = sphi 0, %s44
      %s61 = sphi 0, %s45
      %s67 = sphi 0, %s69
      %s70 = sphi 0, %s67
      %s71 = sphi 0, %s70
      %s87 = sphi 0, %s71
      %s91 = sphi 0, %s91
      %s93 = sphi 0, %s91
      %s94 = sphi 0, %s93
      %s108 = sphi 0, %s94
      %s112 = sphi 0, %s112
      %s114 = sphi 0, %s112
      %s115 = sphi 0, %s114
      %s129 = sphi 0, %s115
      %s135 = sphi 0, %s137
      %s138 = sphi 0, %s135
      %s139 = sphi 0, %s138
      %s155 = sphi 0, %s139
    $region4: #{tpu_custom_call.1} parent=1 // loop_header_branch
      %20 = sbr.rel (%p18) target = $region8
    $region5: #{tpu_custom_call.1} parent=1 // loop_body
      %s22 = ssub.s32 %s17, 1
      %s23 = ssub.s32 %s17, 2
      %s30 = sadd.s32 1, %s25
      %p31 = scmp.ge.s32.totalorder %s30, 2
      %s32 = scalar_select %p31, 0, %s30
      %s33 = sadd.s32 1, %s24
      %s34 = scalar_select %p31, %s33, %s24
      %p35 = scmp.ge.s32.totalorder %s34, 1
      %s36 = scalar_select %p35, 0, %s34
      %s37 = ssub.s32 %s24, %s36
      %s38 = ssub.s32 %s25, %s32
      %s39 = sor.u32 %s37, %s38
      %p40 = scmp.eq.s32.totalorder %s39, 0
      %s42 = sadd.s32 %s41, 1
      %s43 = scalar_select %p40, %s41, %s42
      %p46 = pneg %p40
      %p47 = scmp.eq.s32.totalorder %s17, 1
      %p48 = por %p46, %p47
      %p49 = scmp.ne.s32.totalorder %s41, %s44
      %p50 = scmp.eq.s32.totalorder %s17, 0
      %p51 = por %p49, %p50
      %p52 = scmp.ne.s32.totalorder %s41, %s44
      %p53 = scmp.eq.s32.totalorder %s22, 1
      %p54 = por %p52, %p53
      %p55 = scmp.ne.s32.totalorder %s44, %s45
      %p56 = scmp.eq.s32.totalorder %s22, 0
      %p57 = por %p55, %p56
      %p58 = scmp.ne.s32.totalorder %s44, %s45
      %p59 = scmp.eq.s32.totalorder %s23, 1
      %p60 = por %p58, %p59
      %p62 = scmp.ne.s32.totalorder %s45, %s61
      %p63 = scmp.eq.s32.totalorder %s23, 0
      %p64 = por %p62, %p63
      %s65 = ssub.s32 %s25, %s32
      %p66 = scmp.eq.s32.totalorder %s65, 0
      %s68 = sadd.s32 %s67, 1
      %s69 = scalar_select %p66, %s67, %s68
      %p72 = pneg %p66
      %p73 = scmp.eq.s32.totalorder %s17, 1
      %p74 = por %p72, %p73
      %p75 = scmp.ne.s32.totalorder %s67, %s70
      %p76 = scmp.eq.s32.totalorder %s17, 0
      %p77 = por %p75, %p76
      %p78 = scmp.ne.s32.totalorder %s67, %s70
      %p79 = scmp.eq.s32.totalorder %s22, 1
      %p80 = por %p78, %p79
      %p81 = scmp.ne.s32.totalorder %s70, %s71
      %p82 = scmp.eq.s32.totalorder %s22, 0
      %p83 = por %p81, %p82
      %p84 = scmp.ne.s32.totalorder %s70, %s71
      %p85 = scmp.eq.s32.totalorder %s23, 1
      %p86 = por %p84, %p85
      %p88 = scmp.ne.s32.totalorder %s71, %s87
      %p89 = scmp.eq.s32.totalorder %s23, 0
      %p90 = por %p88, %p89
      %s92 = sadd.s32 %s91, 1
      %p95 = scmp.eq.s32.totalorder %s17, 1
      %p96 = scmp.ne.s32.totalorder %s91, %s93
      %p97 = scmp.eq.s32.totalorder %s17, 0
      %p98 = por %p96, %p97
      %p99 = scmp.ne.s32.totalorder %s91, %s93
      %p100 = scmp.eq.s32.totalorder %s22, 1
      %p101 = por %p99, %p100
      %p102 = scmp.ne.s32.totalorder %s93, %s94
      %p103 = scmp.eq.s32.totalorder %s22, 0
      %p104 = por %p102, %p103
      %p105 = scmp.ne.s32.totalorder %s93, %s94
      %p106 = scmp.eq.s32.totalorder %s23, 1
      %p107 = por %p105, %p106
      %p109 = scmp.ne.s32.totalorder %s94, %s108
      %p110 = scmp.eq.s32.totalorder %s23, 0
      %p111 = por %p109, %p110
      %s113 = sadd.s32 %s112, 1
      %p116 = scmp.eq.s32.totalorder %s17, 1
      %p117 = scmp.ne.s32.totalorder %s112, %s114
      %p118 = scmp.eq.s32.totalorder %s17, 0
      %p119 = por %p117, %p118
      %p120 = scmp.ne.s32.totalorder %s112, %s114
      %p121 = scmp.eq.s32.totalorder %s22, 1
      %p122 = por %p120, %p121
      %p123 = scmp.ne.s32.totalorder %s114, %s115
      %p124 = scmp.eq.s32.totalorder %s22, 0
      %p125 = por %p123, %p124
      %p126 = scmp.ne.s32.totalorder %s114, %s115
      %p127 = scmp.eq.s32.totalorder %s23, 1
      %p128 = por %p126, %p127
      %p130 = scmp.ne.s32.totalorder %s115, %s129
      %p131 = scmp.eq.s32.totalorder %s23, 0
      %p132 = por %p130, %p131
      %s133 = ssub.s32 %s24, %s36
      %p134 = scmp.eq.s32.totalorder %s133, 0
      %s136 = sadd.s32 %s135, 1
      %s137 = scalar_select %p134, %s135, %s136
      %p140 = pneg %p134
      %p141 = scmp.eq.s32.totalorder %s17, 1
      %p142 = por %p140, %p141
      %p143 = scmp.ne.s32.totalorder %s135, %s138
      %p144 = scmp.eq.s32.totalorder %s17, 0
      %p145 = por %p143, %p144
      %p146 = scmp.ne.s32.totalorder %s135, %s138
      %p147 = scmp.eq.s32.totalorder %s22, 1
      %p148 = por %p146, %p147
      %p149 = scmp.ne.s32.totalorder %s138, %s139
      %p150 = scmp.eq.s32.totalorder %s22, 0
      %p151 = por %p149, %p150
      %p152 = scmp.ne.s32.totalorder %s138, %s139
      %p153 = scmp.eq.s32.totalorder %s23, 1
      %p154 = por %p152, %p153
      %p156 = scmp.ne.s32.totalorder %s139, %s155
      %p157 = scmp.eq.s32.totalorder %s23, 0
      %p158 = por %p156, %p157
      %p159 = scmp.le.s32.totalorder 1, %s17
      %p160 = scmp.lt.s32.totalorder %s17, 3
      %p161 = pnand %p159, %p160
      %p162 = pneg %p161
      // Predicated region
      $region9: #{tpu_custom_call.1} parent=5 // pred_check
        _
      $region10: #{tpu_custom_call.1} parent=5 // pred_check_branch
        %164 = sbr.rel (%p161) target = $region12
      $region11: #{tpu_custom_call.1} parent=5 // pred_region
        %s165 = ssub.s32 %s17, 1
        // Predicated region
        $region13: #{tpu_custom_call.1} parent=11 // pred_check
          %p166 = pneg %p104
        $region14: #{tpu_custom_call.1} parent=11 // pred_check_branch
          %168 = sbr.rel (%p166) target = $region16
        $region15: #{tpu_custom_call.1} parent=11 // pred_region
          _
        $region16: #{tpu_custom_call.1} parent=11 // pred_fallthru
          _
        // Predicated region
        $region17: #{tpu_custom_call.1} parent=11 // pred_check
          %p169 = pneg %p125
        $region18: #{tpu_custom_call.1} parent=11 // pred_check_branch
          %171 = sbr.rel (%p169) target = $region20
        $region19: #{tpu_custom_call.1} parent=11 // pred_region
          %173 = vsyncadd [#allocation7], 0
          %s174 = sshll.u32 %s3, 4
          %s175 = int_to_ptr.hbm [resolvable:$true] %s174
          %s176 = sshll.u32 [#allocation8], 4
          %s177 = int_to_ptr.vmem [resolvable:$true] %s176
          %182 = dma.hbm_to_vmem [thread:$0]  %s175, 1024, %s177, [#allocation7], 64, 64, 4
        $region20: #{tpu_custom_call.1} parent=11 // pred_fallthru
          _
      $region12: #{tpu_custom_call.1} parent=5 // pred_fallthru
        _
      %p183 = scmp.lt.s32.totalorder %s17, 2
      // Predicated region
      $region21: #{tpu_custom_call.1} parent=5 // pred_check
        %p184 = pneg %p183
      $region22: #{tpu_custom_call.1} parent=5 // pred_check_branch
        %186 = sbr.rel (%p184) target = $region24
      $region23: #{tpu_custom_call.1} parent=5 // pred_region
        // Predicated region
        $region25: #{tpu_custom_call.1} parent=23 // pred_check
          %p187 = pneg %p51
        $region26: #{tpu_custom_call.1} parent=23 // pred_check_branch
          %189 = sbr.rel (%p187) target = $region28
        $region27: #{tpu_custom_call.1} parent=23 // pred_region
          %s190 = sand.u32 %s41, 1
          %s191 = scalar_lea.sflag [#allocation4], %s190
          %s192 = sand.u32 %s41, 1
          %s193 = smul.addr %s192, 24
          %s194 = scalar_lea.vmem [#allocation3], %s193
          %s195 = smul.u32 2, %s24
          %s196 = smul.u32 3, %s25
          %198 = vsyncadd %s191, 0
          %s199 = smul.addr %s195, 6
          %s200 = sadd.s32 %s196, %s199
          %s201 = smul.addr %s200, 4
          %s202 = scalar_lea.hbm %s0, %s201
          %s203 = sshll.u32 %s202, 4
          %s204 = int_to_ptr.hbm [resolvable:$true] %s203
          %s205 = sshll.u32 %s194, 4
          %s206 = int_to_ptr.vmem [resolvable:$true] %s205
          %211 = dma.hbm_to_vmem [thread:$0]  %s204, 384, %s206, %s191, 384, 192, 12
        $region28: #{tpu_custom_call.1} parent=23 // pred_fallthru
          _
        // Predicated region
        $region29: #{tpu_custom_call.1} parent=23 // pred_check
          %p212 = pneg %p77
        $region30: #{tpu_custom_call.1} parent=23 // pred_check_branch
          %214 = sbr.rel (%p212) target = $region32
        $region31: #{tpu_custom_call.1} parent=23 // pred_region
          %s215 = sand.u32 %s17, 1
          %s216 = scalar_lea.sflag [#allocation7], %s215
          %s217 = sand.u32 %s67, 1
          %s218 = smul.addr %s217, 192
          %s219 = scalar_lea.vmem [#allocation6], %s218
          %s220 = smul.u32 48, %s25
          %222 = vsyncadd %s216, 0
          %s223 = smul.addr %s220, 4
          %s224 = scalar_lea.hbm %s1, %s223
          %s225 = sshll.u32 %s224, 4
          %s226 = int_to_ptr.hbm [resolvable:$true] %s225
          %s227 = sshll.u32 %s219, 4
          %s228 = int_to_ptr.vmem [resolvable:$true] %s227
          %233 = dma.hbm_to_vmem [thread:$0]  %s226, 3072, %s228, %s216, 64, 64, 4
        $region32: #{tpu_custom_call.1} parent=23 // pred_fallthru
          _
      $region24: #{tpu_custom_call.1} parent=5 // pred_fallthru
        _
      %p234 = scmp.le.s32.totalorder 1, %s17
      %p235 = scmp.lt.s32.totalorder %s17, 3
      %p236 = pnand %p234, %p235
      %p237 = pneg %p236
      // Predicated region
      $region33: #{tpu_custom_call.1} parent=5 // pred_check
        _
      $region34: #{tpu_custom_call.1} parent=5 // pred_check_branch
        %239 = sbr.rel (%p236) target = $region36
      $region35: #{tpu_custom_call.1} parent=5 // pred_region
        %s240 = ssub.s32 %s17, 1
        %s241 = sand.u32 %s44, 1
        %s242 = scalar_lea.sflag [#allocation4], %s241
        %s243 = sand.u32 %s44, 1
        %s244 = smul.addr %s243, 24
        %s245 = scalar_lea.vmem [#allocation3], %s244
        // Predicated region
        $region37: #{tpu_custom_call.1} parent=35 // pred_check
          %p246 = pneg %p57
        $region38: #{tpu_custom_call.1} parent=35 // pred_check_branch
          %248 = sbr.rel (%p246) target = $region40
        $region39: #{tpu_custom_call.1} parent=35 // pred_region
          %250 = dma.done %s242, 384
        $region40: #{tpu_custom_call.1} parent=35 // pred_fallthru
          _
        %s251 = sand.u32 %s22, 1
        %s252 = scalar_lea.sflag [#allocation7], %s251
        %s253 = sand.u32 %s70, 1
        %s254 = smul.addr %s253, 192
        %s255 = scalar_lea.vmem [#allocation6], %s254
        // Predicated region
        $region41: #{tpu_custom_call.1} parent=35 // pred_check
          %p256 = pneg %p83
        $region42: #{tpu_custom_call.1} parent=35 // pred_check_branch
          %258 = sbr.rel (%p256) target = $region44
        $region43: #{tpu_custom_call.1} parent=35 // pred_region
          %260 = dma.done %s252, 3072
        $region44: #{tpu_custom_call.1} parent=35 // pred_fallthru
          _
        // Predicated region
        $region45: #{tpu_custom_call.1} parent=35 // pred_check
          %p261 = pneg %p125
        $region46: #{tpu_custom_call.1} parent=35 // pred_check_branch
          %263 = sbr.rel (%p261) target = $region48
        $region47: #{tpu_custom_call.1} parent=35 // pred_region
          %265 = dma.done [#allocation7], 1024
        $region48: #{tpu_custom_call.1} parent=35 // pred_fallthru
          _
        %s266 = sand.u32 %s44, 1
        %s267 = scalar_lea.sflag [#allocation4], %s266
        %s268 = sand.u32 %s44, 1
        %s269 = smul.addr %s268, 24
        %s270 = scalar_lea.vmem [#allocation3], %s269
        %p271 = pneg %p57
        %p272 = pneg %p54
        %s273 = sand.u32 %s22, 1
        %s274 = scalar_lea.sflag [#allocation7], %s273
        %s275 = sand.u32 %s70, 1
        %s276 = smul.addr %s275, 192
        %s277 = scalar_lea.vmem [#allocation6], %s276
        %p278 = pneg %p83
        %p279 = pneg %p80
        %p280 = pneg %p104
        %p281 = pneg %p101
        %p282 = pneg %p125
        %p283 = pneg %p122
        %p284 = pneg %p151
        %p285 = pneg %p148
        %s286 = smul.u32 2, %s26
        %s287 = smul.u32 3, %s27
        %s288 = smul.u32 48, %s27
        %s289 = smul.u32 2, %s26
        %p290 = scmp.eq.s32.totalorder %s27, 0
        // Predicated region
        $region49: #{tpu_custom_call.1} parent=35 // pred_check
          %p291 = pneg %p290
        $region50: #{tpu_custom_call.1} parent=35 // pred_check_branch
          %293 = sbr.rel (%p291) target = $region52
        $region51: #{tpu_custom_call.1} parent=35 // pred_region
          %294 = vst [vmem:[#allocation2] sm:$0xff] 0.0
          %295 = vst [vmem:[#allocation2 + $0x8] sm:$0xff] 0.0
        $region52: #{tpu_custom_call.1} parent=35 // pred_fallthru
          _
        %v296 = vld [vmem:[#allocation2] sm:$0xff]
        %v297 = vld [vmem:[#allocation2 + $0x8] sm:$0xff]
        %v298 = vld [vmem:[%s245] sm:$0xff]
        %v299 = vld [vmem:[%s245 + $0x8] sm:$0xf]
        %v300 = vld [vmem:[%s245 + $0xc] sm:$0xff]
        %v301 = vld [vmem:[%s245 + $0x14] sm:$0xf]
        %v302 = vld [vmem:[%s255] sm:$0xf]
        %v303 = vld [vmem:[%s255 + $0x4] sm:$0xf]
        %v304 = vld [vmem:[%s255 + $0x8] sm:$0xf]
        %v305 = vld [vmem:[%s255 + $0xc] sm:$0xf]
        %v306 = vld [vmem:[%s255 + $0x10] sm:$0xf]
        %v307 = vld [vmem:[%s255 + $0x14] sm:$0xf]
        %v308 = vld [vmem:[%s255 + $0x18] sm:$0xf]
        %v309 = vld [vmem:[%s255 + $0x1c] sm:$0xf]
        %v310 = vld [vmem:[%s255 + $0x20] sm:$0xf]
        %v311 = vld [vmem:[%s255 + $0x24] sm:$0xf]
        %v312 = vld [vmem:[%s255 + $0x28] sm:$0xf]
        %v313 = vld [vmem:[%s255 + $0x2c] sm:$0xf]
        %v314 = vld [vmem:[%s255 + $0x30] sm:$0xf]
        %v315 = vld [vmem:[%s255 + $0x34] sm:$0xf]
        %v316 = vld [vmem:[%s255 + $0x38] sm:$0xf]
        %v317 = vld [vmem:[%s255 + $0x3c] sm:$0xf]
        %v318 = vld [vmem:[%s255 + $0x40] sm:$0xf]
        %v319 = vld [vmem:[%s255 + $0x44] sm:$0xf]
        %v320 = vld [vmem:[%s255 + $0x48] sm:$0xf]
        %v321 = vld [vmem:[%s255 + $0x4c] sm:$0xf]
        %v322 = vld [vmem:[%s255 + $0x50] sm:$0xf]
        %v323 = vld [vmem:[%s255 + $0x54] sm:$0xf]
        %v324 = vld [vmem:[%s255 + $0x58] sm:$0xf]
        %v325 = vld [vmem:[%s255 + $0x5c] sm:$0xf]
        %v326 = vld [vmem:[%s255 + $0x60] sm:$0xf]
        %v327 = vld [vmem:[%s255 + $0x64] sm:$0xf]
        %v328 = vld [vmem:[%s255 + $0x68] sm:$0xf]
        %v329 = vld [vmem:[%s255 + $0x6c] sm:$0xf]
        %v330 = vld [vmem:[%s255 + $0x70] sm:$0xf]
        %v331 = vld [vmem:[%s255 + $0x74] sm:$0xf]
        %v332 = vld [vmem:[%s255 + $0x78] sm:$0xf]
        %v333 = vld [vmem:[%s255 + $0x7c] sm:$0xf]
        %v334 = vld [vmem:[%s255 + $0x80] sm:$0xf]
        %v335 = vld [vmem:[%s255 + $0x84] sm:$0xf]
        %v336 = vld [vmem:[%s255 + $0x88] sm:$0xf]
        %v337 = vld [vmem:[%s255 + $0x8c] sm:$0xf]
        %v338 = vld [vmem:[%s255 + $0x90] sm:$0xf]
        %v339 = vld [vmem:[%s255 + $0x94] sm:$0xf]
        %v340 = vld [vmem:[%s255 + $0x98] sm:$0xf]
        %v341 = vld [vmem:[%s255 + $0x9c] sm:$0xf]
        %v342 = vld [vmem:[%s255 + $0xa0] sm:$0xf]
        %v343 = vld [vmem:[%s255 + $0xa4] sm:$0xf]
        %v344 = vld [vmem:[%s255 + $0xa8] sm:$0xf]
        %v345 = vld [vmem:[%s255 + $0xac] sm:$0xf]
        %v346 = vld [vmem:[%s255 + $0xb0] sm:$0xf]
        %v347 = vld [vmem:[%s255 + $0xb4] sm:$0xf]
        %v348 = vld [vmem:[%s255 + $0xb8] sm:$0xf]
        %v349 = vld [vmem:[%s255 + $0xbc] sm:$0xf]
        %v354 = vunpack.c.l.b16 %v298
        %v355 = vunpack.c.h.b16 %v298
        %v356 = vunpack.c.l.b16 %v299
        %v357 = vunpack.c.l.b16 %v300
        %v358 = vunpack.c.h.b16 %v300
        %v359 = vunpack.c.l.b16 %v301
        %v360 = vpack.c.b16 %v357, %v354
        %v361 = vpack.c.b16 %v358, %v355
        %v362 = vpack.c.b16 %v359, %v356
        %v414 = vunpack.c.l.b16 %v302
        %v415 = vunpack.c.l.b16 %v303
        %v416 = vunpack.c.l.b16 %v304
        %v417 = vunpack.c.l.b16 %v305
        %v418 = vunpack.c.l.b16 %v306
        %v419 = vunpack.c.l.b16 %v307
        %v420 = vunpack.c.l.b16 %v308
        %v421 = vunpack.c.l.b16 %v309
        %v422 = vunpack.c.l.b16 %v310
        %v423 = vunpack.c.l.b16 %v311
        %v424 = vunpack.c.l.b16 %v312
        %v425 = vunpack.c.l.b16 %v313
        %v426 = vunpack.c.l.b16 %v314
        %v427 = vunpack.c.l.b16 %v315
        %v428 = vunpack.c.l.b16 %v316
        %v429 = vunpack.c.l.b16 %v317
        %v430 = vunpack.c.l.b16 %v318
        %v431 = vunpack.c.l.b16 %v319
        %v432 = vunpack.c.l.b16 %v320
        %v433 = vunpack.c.l.b16 %v321
        %v434 = vunpack.c.l.b16 %v322
        %v435 = vunpack.c.l.b16 %v323
        %v436 = vunpack.c.l.b16 %v324
        %v437 = vunpack.c.l.b16 %v325
        %v438 = vunpack.c.l.b16 %v326
        %v439 = vunpack.c.l.b16 %v327
        %v440 = vunpack.c.l.b16 %v328
        %v441 = vunpack.c.l.b16 %v329
        %v442 = vunpack.c.l.b16 %v330
        %v443 = vunpack.c.l.b16 %v331
        %v444 = vunpack.c.l.b16 %v332
        %v445 = vunpack.c.l.b16 %v333
        %v446 = vunpack.c.l.b16 %v334
        %v447 = vunpack.c.l.b16 %v335
        %v448 = vunpack.c.l.b16 %v336
        %v449 = vunpack.c.l.b16 %v337
        %v450 = vunpack.c.l.b16 %v338
        %v451 = vunpack.c.l.b16 %v339
        %v452 = vunpack.c.l.b16 %v340
        %v453 = vunpack.c.l.b16 %v341
        %v454 = vunpack.c.l.b16 %v342
        %v455 = vunpack.c.l.b16 %v343
        %v456 = vunpack.c.l.b16 %v344
        %v457 = vunpack.c.l.b16 %v345
        %v458 = vunpack.c.l.b16 %v346
        %v459 = vunpack.c.l.b16 %v347
        %v460 = vunpack.c.l.b16 %v348
        %v461 = vunpack.c.l.b16 %v349
        %v462 = vpack.c.b16 %v415, %v414
        %v463 = vpack.c.b16 %v417, %v416
        %v464 = vpack.c.b16 %v419, %v418
        %v465 = vpack.c.b16 %v421, %v420
        %v466 = vpack.c.b16 %v423, %v422
        %v467 = vpack.c.b16 %v425, %v424
        %v468 = vpack.c.b16 %v427, %v426
        %v469 = vpack.c.b16 %v429, %v428
        %v470 = vpack.c.b16 %v431, %v430
        %v471 = vpack.c.b16 %v433, %v432
        %v472 = vpack.c.b16 %v435, %v434
        %v473 = vpack.c.b16 %v437, %v436
        %v474 = vpack.c.b16 %v439, %v438
        %v475 = vpack.c.b16 %v441, %v440
        %v476 = vpack.c.b16 %v443, %v442
        %v477 = vpack.c.b16 %v445, %v444
        %v478 = vpack.c.b16 %v447, %v446
        %v479 = vpack.c.b16 %v449, %v448
        %v480 = vpack.c.b16 %v451, %v450
        %v481 = vpack.c.b16 %v453, %v452
        %v482 = vpack.c.b16 %v455, %v454
        %v483 = vpack.c.b16 %v457, %v456
        %v484 = vpack.c.b16 %v459, %v458
        %v485 = vpack.c.b16 %v461, %v460
        %510 = vmatpush.bf16.msra.mxu0 %v469
        %511 = vmatpush.bf16.msra.mxu0 %v468
        %512 = vmatpush.bf16.msra.mxu0 %v467
        %513 = vmatpush.bf16.msra.mxu0 %v466
        %514 = vmatpush.bf16.msra.mxu0 %v465
        %515 = vmatpush.bf16.msra.mxu0 %v464
        %516 = vmatpush.bf16.msra.mxu0 %v463
        %517 = vmatpush.bf16.msra.mxu0 %v462
        %518 = vmatmul.bf16.gmra.mxu0 %v360
        %v519 = vpop.f32.mrf.mxu0
        %v520 = vadd.f32 0.0, %v519
        %v521 = vpop.f32.mrf.mxu0
        %v522 = vadd.f32 0.0, %v521
        %523 = vdwg.mxu0
        %524 = vmatpush.bf16.msra.mxu0 %v477
        %525 = vmatpush.bf16.msra.mxu0 %v476
        %526 = vmatpush.bf16.msra.mxu0 %v475
        %527 = vmatpush.bf16.msra.mxu0 %v474
        %528 = vmatpush.bf16.msra.mxu0 %v473
        %529 = vmatpush.bf16.msra.mxu0 %v472
        %530 = vmatpush.bf16.msra.mxu0 %v471
        %531 = vmatpush.bf16.msra.mxu0 %v470
        %532 = vmatmul.bf16.gmra.mxu0 %v361
        %v533 = vpop.f32.mrf.mxu0
        %v534 = vadd.f32 %v520, %v533
        %v535 = vpop.f32.mrf.mxu0
        %v536 = vadd.f32 %v522, %v535
        %537 = vdwg.mxu0
        %538 = vmatpush.bf16.msra.mxu0 %v485
        %539 = vmatpush.bf16.msra.mxu0 %v484
        %540 = vmatpush.bf16.msra.mxu0 %v483
        %541 = vmatpush.bf16.msra.mxu0 %v482
        %542 = vmatpush.bf16.msra.mxu0 %v481
        %543 = vmatpush.bf16.msra.mxu0 %v480
        %544 = vmatpush.bf16.msra.mxu0 %v479
        %545 = vmatpush.bf16.msra.mxu0 %v478
        %546 = vmatmul.bf16.gmra.mxu0 %v362
        %v547 = vpop.f32.mrf.mxu0
        %v548 = vadd.f32 %v534, %v547
        %v549 = vpop.f32.mrf.mxu0
        %v550 = vadd.f32 %v536, %v549
        %551 = vdwg.mxu0
        %v552 = vadd.f32 %v296, %v548
        %v553 = vadd.f32 %v297, %v550
        %554 = vst [vmem:[#allocation2] sm:$0xff] %v552
        %555 = vst [vmem:[#allocation2 + $0x8] sm:$0xff] %v553
        %p556 = scmp.eq.s32.totalorder %s27, 1
        // Predicated region
        $region53: #{tpu_custom_call.1} parent=35 // pred_check
          %p557 = pneg %p556
        $region54: #{tpu_custom_call.1} parent=35 // pred_check_branch
          %559 = sbr.rel (%p557) target = $region56
        $region55: #{tpu_custom_call.1} parent=35 // pred_region
          %v560 = vld [vmem:[#allocation2] sm:$0xff]
          %v561 = vld [vmem:[#allocation2 + $0x8] sm:$0xff]
          %v562 = vld [vmem:[%s2] sm:$0x1]
          %v564 = vperm.slane %v562, 0
          %v566 = vadd.f32 %v560, %v564
          %v567 = vadd.f32 %v561, %v564
          %v568 = vpack.c.bf16 %v567, %v566
          %v569 = vld [vmem:[#allocation8] sm:$0xf]
          %v570 = vld [vmem:[#allocation8 + $0x4] sm:$0xf]
          %v571 = vld [vmem:[#allocation8 + $0x8] sm:$0xf]
          %v572 = vld [vmem:[#allocation8 + $0xc] sm:$0xf]
          %v573 = vld [vmem:[#allocation8 + $0x10] sm:$0xf]
          %v574 = vld [vmem:[#allocation8 + $0x14] sm:$0xf]
          %v575 = vld [vmem:[#allocation8 + $0x18] sm:$0xf]
          %v576 = vld [vmem:[#allocation8 + $0x1c] sm:$0xf]
          %v577 = vld [vmem:[#allocation8 + $0x20] sm:$0xf]
          %v578 = vld [vmem:[#allocation8 + $0x24] sm:$0xf]
          %v579 = vld [vmem:[#allocation8 + $0x28] sm:$0xf]
          %v580 = vld [vmem:[#allocation8 + $0x2c] sm:$0xf]
          %v581 = vld [vmem:[#allocation8 + $0x30] sm:$0xf]
          %v582 = vld [vmem:[#allocation8 + $0x34] sm:$0xf]
          %v583 = vld [vmem:[#allocation8 + $0x38] sm:$0xf]
          %v584 = vld [vmem:[#allocation8 + $0x3c] sm:$0xf]
          %v601 = vunpack.c.l.b16 %v569
          %v602 = vunpack.c.l.b16 %v570
          %v603 = vunpack.c.l.b16 %v571
          %v604 = vunpack.c.l.b16 %v572
          %v605 = vunpack.c.l.b16 %v573
          %v606 = vunpack.c.l.b16 %v574
          %v607 = vunpack.c.l.b16 %v575
          %v608 = vunpack.c.l.b16 %v576
          %v609 = vunpack.c.l.b16 %v577
          %v610 = vunpack.c.l.b16 %v578
          %v611 = vunpack.c.l.b16 %v579
          %v612 = vunpack.c.l.b16 %v580
          %v613 = vunpack.c.l.b16 %v581
          %v614 = vunpack.c.l.b16 %v582
          %v615 = vunpack.c.l.b16 %v583
          %v616 = vunpack.c.l.b16 %v584
          %v617 = vpack.c.b16 %v602, %v601
          %v618 = vpack.c.b16 %v604, %v603
          %v619 = vpack.c.b16 %v606, %v605
          %v620 = vpack.c.b16 %v608, %v607
          %v621 = vpack.c.b16 %v610, %v609
          %v622 = vpack.c.b16 %v612, %v611
          %v623 = vpack.c.b16 %v614, %v613
          %v624 = vpack.c.b16 %v616, %v615
          %633 = vmatpush.bf16.msra.mxu0 %v624
          %634 = vmatpush.bf16.msra.mxu0 %v623
          %635 = vmatpush.bf16.msra.mxu0 %v622
          %636 = vmatpush.bf16.msra.mxu0 %v621
          %637 = vmatpush.bf16.msra.mxu0 %v620
          %638 = vmatpush.bf16.msra.mxu0 %v619
          %639 = vmatpush.bf16.msra.mxu0 %v618
          %640 = vmatpush.bf16.msra.mxu0 %v617
          %641 = vmatmul.bf16.gmra.mxu0 %v568
          %v642 = vpop.f32.mrf.mxu0
          %v643 = vadd.f32 0.0, %v642
          %v644 = vpop.f32.mrf.mxu0
          %v645 = vadd.f32 0.0, %v644
          %646 = vdwg.mxu0
          %v647 = vmul.f32 %v643, %v643
          %v648 = vmul.f32 %v645, %v645
          %649 = vadd.xlane.f32.xlu0 %v647
          %v650 = vpop.xlane.xlu0 %649
          %651 = vadd.xlane.f32.xlu0 %v648
          %v652 = vpop.xlane.xlu0 %651
          %v653 = vmax.f32 %v650, 1e-24
          %v654 = vmax.f32 %v652, 1e-24
          %v655 = vrsqrt.pop %v653
          %v656 = vmul.f32 %v655, %v653
          %v657 = vmul.f32 %v656, %v655
          %v658 = vmul.f32 0.5, %v657
          %v659 = vsub.f32 1.5, %v658
          %v660 = vmul.f32 %v655, %v659
          %vm661 = vweird.f32 %v653
          %vm662 = vweird.f32 %v655
          %vm663 = vmor %vm661, %vm662
          %v664 = vsel %vm663, %v655, %v660
          %v665 = vrsqrt.pop %v654
          %v666 = vmul.f32 %v665, %v654
          %v667 = vmul.f32 %v666, %v665
          %v668 = vmul.f32 0.5, %v667
          %v669 = vsub.f32 1.5, %v668
          %v670 = vmul.f32 %v665, %v669
          %vm671 = vweird.f32 %v654
          %vm672 = vweird.f32 %v665
          %vm673 = vmor %vm671, %vm672
          %v674 = vsel %vm673, %v665, %v670
          %v675 = vmul.f32 %v643, %v664
          %v676 = vmul.f32 %v645, %v674
          %v677 = vpack.c.bf16 %v675, %v675
          %v678 = vpack.c.bf16 %v676, %v676
          %679 = vst [vmem:[#allocation9] sm:$0xf] %v677
          %680 = vst [vmem:[#allocation9 + $0x4] sm:$0xf] %v678
        $region56: #{tpu_custom_call.1} parent=35 // pred_fallthru
          _
        // Predicated region
        $region57: #{tpu_custom_call.1} parent=35 // pred_check
          %p681 = pneg %p148
        $region58: #{tpu_custom_call.1} parent=35 // pred_check_branch
          %683 = sbr.rel (%p681) target = $region60
        $region59: #{tpu_custom_call.1} parent=35 // pred_region
          %s684 = smul.u32 2, %s26
          %686 = vsyncadd [#allocation5], 0
          %s687 = smul.addr %s684, 4
          %s688 = scalar_lea.hbm %s4, %s687
          %s689 = sshll.u32 [#allocation9], 4
          %s690 = int_to_ptr.vmem [resolvable:$true] %s689
          %s691 = sshll.u32 %s688, 4
          %s692 = int_to_ptr.hbm [resolvable:$true] %s691
          %697 = dma.vmem_to_hbm [thread:$0]  %s690, 128, %s692, [#allocation5], 64, 64, 4
        $region60: #{tpu_custom_call.1} parent=35 // pred_fallthru
          _
        // Predicated region
        $region61: #{tpu_custom_call.1} parent=35 // pred_check
          %p698 = pneg %p148
        $region62: #{tpu_custom_call.1} parent=35 // pred_check_branch
          %700 = sbr.rel (%p698) target = $region64
        $region63: #{tpu_custom_call.1} parent=35 // pred_region
          %702 = dma.done [#allocation5], 128
        $region64: #{tpu_custom_call.1} parent=35 // pred_fallthru
          _
      $region36: #{tpu_custom_call.1} parent=5 // pred_fallthru
        _
      %p703 = scmp.le.s32.totalorder 2, %s17
      // Predicated region
      $region65: #{tpu_custom_call.1} parent=5 // pred_check
        %p704 = pneg %p703
      $region66: #{tpu_custom_call.1} parent=5 // pred_check_branch
        %706 = sbr.rel (%p704) target = $region68
      $region67: #{tpu_custom_call.1} parent=5 // pred_region
        %s707 = ssub.s32 %s17, 2
      $region68: #{tpu_custom_call.1} parent=5 // pred_fallthru
        _
    $region6: #{tpu_custom_call.1} parent=1 // loop_footer
      %s21 = sadd.s32 1, %s17
    $region7: #{tpu_custom_call.1} parent=1 // loop_footer_branch
      %16 = sbr.rel target = $region3
    $region8: #{tpu_custom_call.1} parent=1 // loop_exit
      _
    %708 = vsyncpa [#allocation4], 1
    %s709 = scalar_lea.sflag [#allocation4], 1
    %710 = vsyncpa %s709, 1
    %711 = vsyncpa [#allocation7], 1
    %s712 = scalar_lea.sflag [#allocation7], 1
    %713 = vsyncpa %s712, 1
    %714 = vsyncpa [#allocation5], 1
    %s715 = scalar_lea.sflag [#allocation5], 1
    %716 = vsyncpa %s715, 1

</llo_original>
